<compile_context>
chip_gen: v5e
topology: v5e:2x2
jax: 0.10.0
libtpu: 0.0.40
codegen_flags: <defaults>
</compile_context>

<pallas_src>
import functools

import numpy as np
import jax
import jax.numpy as jnp
from jax.experimental import pallas as pl
from jax.experimental.pallas import tpu as pltpu

LOG_STD_MAX = 2.0
LOG_STD_MIN = -5.0          # matches the module spec (not SpinningUp's -20)

_HEAD = 128                 # single 128-lane fused head (one vreg lane-width)
_HALF = _HEAD // 2          # log_std sub-slot offset inside the fused head
_TB_MAX = 1024              # max batch-tile rows
_LN2 = float(np.log(2.0))
_LOG_2PI = float(np.log(2.0 * np.pi))


def _round_up(x, m):
    return ((x + m - 1) // m) * m


def _actor_kernel(obs_ref, w1_ref, wh_ref, b_ref, eps_ref, out_ref, eps_w, *,
                  act_dim, act_limit):
    obs = obs_ref[...].astype(jnp.bfloat16)                    # (TB, obs_dim)
    b1 = b_ref[0:1, :]                                         # (1, 256)
    bh = b_ref[1:2, :_HEAD]                                    # (1, 128)

    # fc + relu (bf16 MXU matmul, f32 accumulation)
    net = jnp.dot(obs, w1_ref[...], preferred_element_type=jnp.float32)
    net = jnp.maximum(net + b1, 0.0)                           # (TB, 256) f32

    # fused single-lane-group head: mu in lanes [0, act_dim), log_std in [64, 64+act_dim)
    heads = jnp.dot(net.astype(jnp.bfloat16), wh_ref[...],
                    preferred_element_type=jnp.float32) + bh   # (TB, 128)
    mu = heads
    log_std = pltpu.roll(heads, shift=_HALF, axis=1)           # XLU lane rotate (free slot)
    log_std = jnp.clip(log_std, LOG_STD_MIN, LOG_STD_MAX)
    std = jnp.exp(log_std)

    # widen the narrow (TB, act_dim) noise to the 128-lane compute shape via VMEM scratch
    eps_w[...] = jnp.zeros_like(eps_w)
    eps_w[:, :act_dim] = eps_ref[...]
    eps = eps_w[...]                                           # (TB, 128), zeros past act_dim

    # rsample: pi = mu + std * eps   (padded lanes stay bounded, masked below)
    pi = mu + std * eps

    lane = jax.lax.broadcasted_iota(jnp.int32, pi.shape, 1)
    valid = lane < act_dim

    # shared transcendental: e = exp(-2|pi|) feeds both the stable softplus and tanh
    e = jnp.exp(-2.0 * jnp.abs(pi))
    softplus_neg2pi = jnp.maximum(-2.0 * pi, 0.0) + jnp.log1p(e)
    corr = 2.0 * (_LN2 - pi - softplus_neg2pi)
    # Normal(mu, std).log_prob(pi) = -0.5*eps^2 - log_std - 0.5*log(2*pi)
    logp_elem = -0.5 * eps * eps - log_std - 0.5 * _LOG_2PI - corr
    logp_sum = jnp.sum(jnp.where(valid, logp_elem, 0.0),
                       axis=-1, keepdims=True)                 # (TB, 1)

    # tanh(pi) = sign(pi) * (1 - e) / (1 + e)   (reuses e, no separate tanh map)
    tanh_pi = jnp.where(pi >= 0.0, 1.0, -1.0) * (1.0 - e) / (1.0 + e)
    act = jnp.float32(act_limit) * tanh_pi                     # (TB, 128)

    # lane-dense packed output: lanes [0, act_dim) = action, lane act_dim = logp
    out = jnp.where(valid, act, 0.0)
    out = jnp.where(lane == act_dim, logp_sum, out)
    out_ref[...] = out


def pack_actor_params(params):
    """One-time parameter prep (hoisted out of the per-call path).

    Fuses mu/log_std into a single (hidden, 128) bf16 head weight, stacks all
    biases into one (2, hidden) f32 block (row 0 = fc bias (256 lanes), row 1 =
    packed head bias in its first 128 lanes), and casts matmul weights to bf16.
    """
    w1, b1, wmu, bmu, wls, bls = params
    obs_dim, hidden = w1.shape
    act_dim = wmu.shape[1]
    assert hidden == 256, "module fixes the hidden layer at 256"
    assert act_dim < _HALF, "mu/log_std share one 128-lane head (+1 spare lane for logp)"

    wh = jnp.zeros((hidden, _HEAD), jnp.float32)
    wh = wh.at[:, :act_dim].set(wmu)
    wh = wh.at[:, _HALF:_HALF + act_dim].set(wls)

    # NOTE: row width is `hidden` (=256); row 1 only uses its first 128 lanes.
    b_all = jnp.zeros((2, hidden), jnp.float32)
    b_all = b_all.at[0, :].set(b1[0])
    b_all = b_all.at[1, :act_dim].set(bmu[0])
    b_all = b_all.at[1, _HALF:_HALF + act_dim].set(bls[0])

    return (w1.astype(jnp.bfloat16), wh.astype(jnp.bfloat16), b_all, act_dim)


def actor_forward(obs, packed, eps, act_limit):
    """Fused Actor forward. Returns (pi_action (B, act_dim), logp_pi (B,))."""
    w1b, whb, b_all, act_dim = packed
    B, obs_dim = obs.shape
    hidden = w1b.shape[1]
    assert eps.shape == (B, act_dim)

    # --- batch tiling: large tiles, but >= 2 blocks when possible (v7x dual TC) ----
    B8 = _round_up(B, 8)
    if B8 <= 8:
        TB = B8
    else:
        TB = min(_TB_MAX, _round_up((B8 + 1) // 2, 8))
    B_pad = _round_up(B8, TB)
    n_blocks = B_pad // TB

    if B_pad == B:
        obs_p, eps_p = obs, eps
    else:
        obs_p = jnp.zeros((B_pad, obs_dim), obs.dtype).at[:B].set(obs)
        eps_p = jnp.zeros((B_pad, act_dim), eps.dtype).at[:B].set(eps)

    # --- cost hint for XLA scheduling ---------------------------------------------
    flops = 2 * B_pad * (obs_dim * hidden + hidden * _HEAD)
    transcendentals = 3 * B_pad * _HEAD            # exp(log_std), exp(-2|pi|), log1p
    bytes_accessed = (4 * B_pad * obs_dim          # obs (f32)
                      + 2 * obs_dim * hidden       # w1 (bf16)
                      + 2 * hidden * _HEAD         # fused head weight (bf16)
                      + 4 * 2 * hidden             # biases (f32)
                      + 4 * B_pad * act_dim        # eps (f32, narrow)
                      + 4 * B_pad * _HEAD)         # packed output (f32)
    cost = pl.CostEstimate(flops=flops, transcendentals=transcendentals,
                           bytes_accessed=bytes_accessed)

    out = pl.pallas_call(
        functools.partial(_actor_kernel, act_dim=act_dim,
                          act_limit=float(act_limit)),
        out_shape=jax.ShapeDtypeStruct((B_pad, _HEAD), jnp.float32),
        grid=(n_blocks,),
        in_specs=[
            pl.BlockSpec((TB, obs_dim), lambda i: (i, 0)),        # obs (batch-tiled)
            pl.BlockSpec((obs_dim, hidden), lambda i: (0, 0)),    # w1 (resident, bf16)
            pl.BlockSpec((hidden, _HEAD), lambda i: (0, 0)),      # fused head (resident, bf16)
            pl.BlockSpec((2, hidden), lambda i: (0, 0)),          # all biases
            pl.BlockSpec((TB, act_dim), lambda i: (i, 0)),        # eps (batch-tiled, narrow)
        ],
        out_specs=pl.BlockSpec((TB, _HEAD), lambda i: (i, 0)),
        scratch_shapes=[pltpu.VMEM((TB, _HEAD), jnp.float32)],    # eps widening buffer
        compiler_params=pltpu.CompilerParams(
            dimension_semantics=("parallel",)),
        cost_estimate=cost,
    )(obs_p, w1b, whb, b_all, eps_p)

    pi_action = out[:B, :act_dim]
    logp_pi = out[:B, act_dim]
    return pi_action, logp_pi


def init_params(key, obs_dim, hidden, act_dim):
    """PyTorch-Linear-style init: U(-1/sqrt(fan_in), 1/sqrt(fan_in))."""
    ks = jax.random.split(key, 6)

    def lin(kw, kb, fan_in, fan_out):
        bound = 1.0 / float(np.sqrt(fan_in))
        w = jax.random.uniform(kw, (fan_in, fan_out), jnp.float32, -bound, bound)
        b = jax.random.uniform(kb, (1, fan_out), jnp.float32, -bound, bound)
        return w, b

    w1, b1 = lin(ks[0], ks[1], obs_dim, hidden)
    wmu, bmu = lin(ks[2], ks[3], hidden, act_dim)
    wls, bls = lin(ks[4], ks[5], hidden, act_dim)
    return (w1, b1, wmu, bmu, wls, bls)


if __name__ == "__main__":
    B = 10         # batch (exercises row padding and the >=2-block grid split)
    OBS_DIM = 16   # flattened observation dim
    HIDDEN = 256   # fixed by nn.Linear(..., 256) in the module
    ACT_DIM = 4
    ACT_LIMIT = 1.0

    root = jax.random.PRNGKey(0)
    k_obs, k_params, k_eps = jax.random.split(root, 3)

    obs = jax.random.normal(k_obs, (B, OBS_DIM), jnp.float32)
    params = init_params(k_params, OBS_DIM, HIDDEN, ACT_DIM)
    eps = jax.random.normal(k_eps, (B, ACT_DIM), jnp.float32)   # rsample noise

    packed = pack_actor_params(params)                          # one-time prep
    pi_action, logp_pi = actor_forward(obs, packed, eps, ACT_LIMIT)
    jax.block_until_ready((pi_action, logp_pi))

    # Pure-JAX references of the module's stochastic forward pass.
    w1, b1, wmu, bmu, wls, bls = params

    def ref_forward(bf16_matmuls):
        def mm(a, w):
            if bf16_matmuls:   # mirrors the kernel's mixed-precision matmuls
                return jnp.dot(a.astype(jnp.bfloat16), w.astype(jnp.bfloat16),
                               preferred_element_type=jnp.float32)
            return jnp.dot(a, w)
        net = jax.nn.relu(mm(obs, w1) + b1)
        mu = mm(net, wmu) + bmu
        log_std = jnp.clip(mm(net, wls) + bls, LOG_STD_MIN, LOG_STD_MAX)
        std = jnp.exp(log_std)
        pi = mu + std * eps
        logp = jnp.sum(-0.5 * ((pi - mu) / std) ** 2 - log_std
                       - 0.5 * jnp.log(2.0 * jnp.pi), axis=-1)
        logp -= jnp.sum(2.0 * (jnp.log(2.0) - pi - jax.nn.softplus(-2.0 * pi)),
                        axis=-1)
        return ACT_LIMIT * jnp.tanh(pi), logp

    act_bf, logp_bf = ref_forward(True)     # same matmul precision as the kernel
    act_f32, logp_f32 = ref_forward(False)  # full-f32 module semantics

    assert pi_action.shape == (B, ACT_DIM) and logp_pi.shape == (B,)
    assert jnp.allclose(pi_action, act_bf, atol=1e-4), "action mismatch (bf16 ref)"
    assert jnp.allclose(logp_pi, logp_bf, atol=1e-3), "logp mismatch (bf16 ref)"
    # bf16 matmuls introduce only a small drift vs. the full-f32 module math
    assert jnp.allclose(pi_action, act_f32, atol=5e-2), "action drift vs f32 ref"
    assert jnp.allclose(logp_pi, logp_f32, atol=2.5e-1), "logp drift vs f32 ref"

    print("KERNEL_OK")
</pallas_src>

<mosaic_0001>
module attributes {stable_mosaic.version = 11 : i64} {
  func.func @_actor_kernel(%arg0: i32, %arg1: memref<8x16xf32, #tpu.memory_space<vmem>>, %arg2: memref<16x256xbf16, #tpu.memory_space<vmem>>, %arg3: memref<256x128xbf16, #tpu.memory_space<vmem>>, %arg4: memref<2x256xf32, #tpu.memory_space<vmem>>, %arg5: memref<8x4xf32, #tpu.memory_space<vmem>>, %arg6: memref<8x128xf32, #tpu.memory_space<vmem>>, %arg7: memref<8x128xf32, #tpu.memory_space<vmem>>) attributes {dimension_semantics = [#tpu.dimension_semantics<parallel>], iteration_bounds = array<i64: 2>, scalar_prefetch = 0 : i64, scratch_operands = 1 : i64, tpu.core_type = #tpu.core_type<tc>, window_params = [{transform_indices = @transform_0, window_bounds = array<i64: 8, 16>}, {pipeline_mode = #tpu.pipeline_mode<synchronous>, transform_indices = @transform_1, window_bounds = array<i64: 16, 256>}, {pipeline_mode = #tpu.pipeline_mode<synchronous>, transform_indices = @transform_2, window_bounds = array<i64: 256, 128>}, {pipeline_mode = #tpu.pipeline_mode<synchronous>, transform_indices = @transform_3, window_bounds = array<i64: 2, 256>}, {transform_indices = @transform_4, window_bounds = array<i64: 8, 4>}, {transform_indices = @transform_5, window_bounds = array<i64: 8, 128>}]} {
    %c0 = arith.constant 0 : index
    %c0_0 = arith.constant 0 : index
    %0 = vector.load %arg1[%c0, %c0_0] : memref<8x16xf32, #tpu.memory_space<vmem>>, vector<8x16xf32>
    %1 = arith.truncf %0 : vector<8x16xf32> to vector<8x16xbf16>
    %c0_1 = arith.constant 0 : index
    %c0_2 = arith.constant 0 : index
    %2 = vector.load %arg4[%c0_1, %c0_2] : memref<2x256xf32, #tpu.memory_space<vmem>>, vector<1x256xf32>
    %c1 = arith.constant 1 : index
    %c0_3 = arith.constant 0 : index
    %3 = vector.load %arg4[%c1, %c0_3] : memref<2x256xf32, #tpu.memory_space<vmem>>, vector<1x128xf32>
    %c0_4 = arith.constant 0 : index
    %c0_5 = arith.constant 0 : index
    %4 = vector.load %arg2[%c0_4, %c0_5] : memref<16x256xbf16, #tpu.memory_space<vmem>>, vector<16x256xbf16>
    %cst = arith.constant dense<0.000000e+00> : vector<8x256xf32>
    %5 = tpu.matmul %1, %4, %cst {dimension_numbers = #tpu.dot_dimension_numbers<[1], [0], [0], [1], [0, 0, 1, 1], [], []>} : vector<8x16xbf16>, vector<16x256xbf16>, vector<8x256xf32> -> vector<8x256xf32>
    %6 = vector.broadcast %2 : vector<1x256xf32> to vector<8x256xf32>
    %7 = arith.addf %5, %6 : vector<8x256xf32>
    %cst_6 = arith.constant 0.000000e+00 : f32
    %8 = vector.broadcast %cst_6 : f32 to vector<8x256xf32>
    %9 = arith.maximumf %7, %8 : vector<8x256xf32>
    %10 = arith.truncf %9 : vector<8x256xf32> to vector<8x256xbf16>
    %c0_7 = arith.constant 0 : index
    %c0_8 = arith.constant 0 : index
    %11 = vector.load %arg3[%c0_7, %c0_8] : memref<256x128xbf16, #tpu.memory_space<vmem>>, vector<256x128xbf16>
    %cst_9 = arith.constant dense<0.000000e+00> : vector<8x128xf32>
    %12 = tpu.matmul %10, %11, %cst_9 {dimension_numbers = #tpu.dot_dimension_numbers<[1], [0], [0], [1], [0, 0, 1, 1], [], []>} : vector<8x256xbf16>, vector<256x128xbf16>, vector<8x128xf32> -> vector<8x128xf32>
    %13 = vector.broadcast %3 : vector<1x128xf32> to vector<8x128xf32>
    %14 = arith.addf %12, %13 : vector<8x128xf32>
    %c64_i32 = arith.constant 64 : i32
    %15 = tpu.dynamic_rotate %14 by %c64_i32 dim 1 : vector<8x128xf32>, i32 -> vector<8x128xf32>
    %cst_10 = arith.constant -5.000000e+00 : f32
    %cst_11 = arith.constant 2.000000e+00 : f32
    %16 = vector.broadcast %cst_10 : f32 to vector<8x128xf32>
    %17 = arith.maximumf %16, %15 : vector<8x128xf32>
    %18 = vector.broadcast %cst_11 : f32 to vector<8x128xf32>
    %19 = arith.minimumf %18, %17 : vector<8x128xf32>
    %20 = math.exp %19 : vector<8x128xf32>
    %cst_12 = arith.constant 0.000000e+00 : f32
    %21 = vector.broadcast %cst_12 : f32 to vector<8x128xf32>
    %c0_13 = arith.constant 0 : index
    %c0_14 = arith.constant 0 : index
    %22 = vector.load %arg7[%c0_13, %c0_14] : memref<8x128xf32, #tpu.memory_space<vmem>>, vector<8x128xf32>
    tpu.vector_store %arg7[%c0_13, %c0_14], %21 {strides = array<i32>} : memref<8x128xf32, #tpu.memory_space<vmem>>, vector<8x128xf32>,
    %c0_15 = arith.constant 0 : index
    %c0_16 = arith.constant 0 : index
    %23 = vector.load %arg5[%c0_15, %c0_16] : memref<8x4xf32, #tpu.memory_space<vmem>>, vector<8x4xf32>
    %c0_17 = arith.constant 0 : index
    %c0_18 = arith.constant 0 : index
    %24 = vector.load %arg7[%c0_17, %c0_18] : memref<8x128xf32, #tpu.memory_space<vmem>>, vector<8x4xf32>
    tpu.vector_store %arg7[%c0_17, %c0_18], %23 {strides = array<i32>} : memref<8x128xf32, #tpu.memory_space<vmem>>, vector<8x4xf32>,
    %c0_19 = arith.constant 0 : index
    %c0_20 = arith.constant 0 : index
    %25 = vector.load %arg7[%c0_19, %c0_20] : memref<8x128xf32, #tpu.memory_space<vmem>>, vector<8x128xf32>
    %26 = arith.mulf %20, %25 : vector<8x128xf32>
    %27 = arith.addf %14, %26 : vector<8x128xf32>
    %28 = tpu.iota {dimensions = array<i32: 1>} : vector<8x128xi32>
    %c4_i32 = arith.constant 4 : i32
    %29 = vector.broadcast %c4_i32 : i32 to vector<8x128xi32>
    %30 = arith.cmpi slt, %28, %29 : vector<8x128xi32>
    %31 = math.absf %27 : vector<8x128xf32>
    %cst_21 = arith.constant -2.000000e+00 : f32
    %32 = vector.broadcast %cst_21 : f32 to vector<8x128xf32>
    %33 = arith.mulf %32, %31 : vector<8x128xf32>
    %34 = math.exp %33 : vector<8x128xf32>
    %cst_22 = arith.constant -2.000000e+00 : f32
    %35 = vector.broadcast %cst_22 : f32 to vector<8x128xf32>
    %36 = arith.mulf %35, %27 : vector<8x128xf32>
    %cst_23 = arith.constant 0.000000e+00 : f32
    %37 = vector.broadcast %cst_23 : f32 to vector<8x128xf32>
    %38 = arith.maximumf %36, %37 : vector<8x128xf32>
    %39 = math.log1p %34 : vector<8x128xf32>
    %40 = arith.addf %38, %39 : vector<8x128xf32>
    %cst_24 = arith.constant 0.693147182 : f32
    %41 = vector.broadcast %cst_24 : f32 to vector<8x128xf32>
    %42 = arith.subf %41, %27 : vector<8x128xf32>
    %43 = arith.subf %42, %40 : vector<8x128xf32>
    %cst_25 = arith.constant 2.000000e+00 : f32
    %44 = vector.broadcast %cst_25 : f32 to vector<8x128xf32>
    %45 = arith.mulf %44, %43 : vector<8x128xf32>
    %cst_26 = arith.constant -5.000000e-01 : f32
    %46 = vector.broadcast %cst_26 : f32 to vector<8x128xf32>
    %47 = arith.mulf %46, %25 : vector<8x128xf32>
    %48 = arith.mulf %47, %25 : vector<8x128xf32>
    %49 = arith.subf %48, %19 : vector<8x128xf32>
    %cst_27 = arith.constant 0.918938517 : f32
    %50 = vector.broadcast %cst_27 : f32 to vector<8x128xf32>
    %51 = arith.subf %49, %50 : vector<8x128xf32>
    %52 = arith.subf %51, %45 : vector<8x128xf32>
    %cst_28 = arith.constant 0.000000e+00 : f32
    %53 = vector.broadcast %cst_28 : f32 to vector<8x128xf32>
    %54 = arith.select %30, %52, %53 : vector<8x128xi1>, vector<8x128xf32>
    %cst_29 = arith.constant dense<0.000000e+00> : vector<8xf32>
    %55 = vector.multi_reduction <add>, %54, %cst_29 [1] : vector<8x128xf32> to vector<8xf32>
    %56 = vector.shape_cast %55 : vector<8xf32> to vector<8x1xf32>
    %cst_30 = arith.constant 0.000000e+00 : f32
    %57 = vector.broadcast %cst_30 : f32 to vector<8x128xf32>
    %58 = arith.cmpf oge, %27, %57 : vector<8x128xf32>
    %cst_31 = arith.constant 1.000000e+00 : f32
    %cst_32 = arith.constant -1.000000e+00 : f32
    %59 = vector.broadcast %cst_31 : f32 to vector<8x128xf32>
    %60 = vector.broadcast %cst_32 : f32 to vector<8x128xf32>
    %61 = arith.select %58, %59, %60 : vector<8x128xi1>, vector<8x128xf32>
    %cst_33 = arith.constant 1.000000e+00 : f32
    %62 = vector.broadcast %cst_33 : f32 to vector<8x128xf32>
    %63 = arith.subf %62, %34 : vector<8x128xf32>
    %64 = arith.mulf %61, %63 : vector<8x128xf32>
    %cst_34 = arith.constant 1.000000e+00 : f32
    %65 = vector.broadcast %cst_34 : f32 to vector<8x128xf32>
    %66 = arith.addf %65, %34 : vector<8x128xf32>
    %67 = arith.divf %64, %66 : vector<8x128xf32>
    %cst_35 = arith.constant 1.000000e+00 : f32
    %68 = vector.broadcast %cst_35 : f32 to vector<8x128xf32>
    %69 = arith.mulf %68, %67 : vector<8x128xf32>
    %cst_36 = arith.constant 0.000000e+00 : f32
    %70 = vector.broadcast %cst_36 : f32 to vector<8x128xf32>
    %71 = arith.select %30, %69, %70 : vector<8x128xi1>, vector<8x128xf32>
    %c4_i32_37 = arith.constant 4 : i32
    %72 = vector.broadcast %c4_i32_37 : i32 to vector<8x128xi32>
    %73 = arith.cmpi eq, %28, %72 : vector<8x128xi32>
    %74 = vector.shape_cast %56 : vector<8x1xf32> to vector<8x1xf32>
    %75 = vector.broadcast %74 : vector<8x1xf32> to vector<8x128xf32>
    %76 = arith.select %73, %75, %71 : vector<8x128xi1>, vector<8x128xf32>
    %c0_38 = arith.constant 0 : index
    %c0_39 = arith.constant 0 : index
    %77 = vector.load %arg6[%c0_38, %c0_39] : memref<8x128xf32, #tpu.memory_space<vmem>>, vector<8x128xf32>
    tpu.vector_store %arg6[%c0_38, %c0_39], %76 {strides = array<i32>} : memref<8x128xf32, #tpu.memory_space<vmem>>, vector<8x128xf32>,
    return
  }
  func.func @transform_0(%arg0: i32) -> (i32, i32) {
    %c0_i32 = arith.constant 0 : i32
    %c0_i32_0 = arith.constant 0 : i32
    return %arg0, %c0_i32 : i32, i32
  }
  func.func @transform_1(%arg0: i32) -> (i32, i32) {
    %c0_i32 = arith.constant 0 : i32
    %c0_i32_0 = arith.constant 0 : i32
    %c0_i32_1 = arith.constant 0 : i32
    return %c0_i32, %c0_i32_0 : i32, i32
  }
  func.func @transform_2(%arg0: i32) -> (i32, i32) {
    %c0_i32 = arith.constant 0 : i32
    %c0_i32_0 = arith.constant 0 : i32
    %c0_i32_1 = arith.constant 0 : i32
    return %c0_i32, %c0_i32_0 : i32, i32
  }
  func.func @transform_3(%arg0: i32) -> (i32, i32) {
    %c0_i32 = arith.constant 0 : i32
    %c0_i32_0 = arith.constant 0 : i32
    %c0_i32_1 = arith.constant 0 : i32
    return %c0_i32, %c0_i32_0 : i32, i32
  }
  func.func @transform_4(%arg0: i32) -> (i32, i32) {
    %c0_i32 = arith.constant 0 : i32
    %c0_i32_0 = arith.constant 0 : i32
    return %arg0, %c0_i32 : i32, i32
  }
  func.func @transform_5(%arg0: i32) -> (i32, i32) {
    %c0_i32 = arith.constant 0 : i32
    %c0_i32_0 = arith.constant 0 : i32
    return %arg0, %c0_i32 : i32, i32
  }
}

</mosaic_0001>

<llo_original>
// kernel: tpu_custom_call.1
$region0: #{tpu_custom_call.1}
  #allocation0 [shape = 'u32[]', space=smem, size = 0x4, offset = 0x4, fixed_abs, tag = 'smem constant byte address 0x4 - core index']
  #allocation1 [shape = 'u32[72,128]{1,0:T(1,128)}', space=vmem, size = 0x9000, scoped, tag = 'internal scratch']
  #allocation2 [shape = 'f32[8,128]{1,0:T(8,128)}', space=vmem, size = 0x1000, scoped, tag = 'scratch operand']
  %s0 = inlined_call_operand.vmem [shape: f32[16,16], index: 0, kind: input, shape index: {}]
  %s1 = inlined_call_operand.hbm [shape: bf16[16,256], index: 1, kind: input, shape index: {}]
  %s2 = inlined_call_operand.hbm [shape: bf16[256,128], index: 2, kind: input, shape index: {}]
  %s3 = inlined_call_operand.vmem [shape: f32[2,256], index: 3, kind: input, shape index: {}]
  %s4 = inlined_call_operand.vmem [shape: f32[16,4], index: 4, kind: input, shape index: {}]
  %s5 = inlined_call_operand.hbm [shape: f32[16,128], index: 5, kind: output, shape index: {}]
  %s6 = sld [smem:[#allocation0]]
  $region61: #{tpu_custom_call.1} parent=0
    _
  %s8 = ssub.s32 1, %s6
  %s9 = scalar_select 0, %s8, %s6
  $region1: #{tpu_custom_call.1} parent=0
    #allocation3 [shape = 'u8[8192]{0}', space=vmem, size = 0x2000, scoped, tag = 'input window, operand 1, single buffered']
    #allocation4 [shape = 's32[2]{0}', space=sflag, size = 0x8, scoped, tag = 'scoped memory for tpu_custom_call.1']
    #allocation5 [shape = 's32[2]{0}', space=sflag, size = 0x8, scoped, tag = 'scoped memory for tpu_custom_call.1']
    #allocation6 [shape = 'u8[65536]{0}', space=vmem, size = 0x10000, scoped, tag = 'input window, operand 2, single buffered']
    #allocation7 [shape = 's32[1]{0}', space=sflag, size = 0x4, scoped, tag = 'scoped memory for tpu_custom_call.1']
    #allocation8 [shape = 'u8[8192]{0}', space=vmem, size = 0x2000, scoped, tag = 'output window, operand 0']
    %10 = vsyncpa [#allocation4], 0
    %11 = vsyncpa [#allocation7], 0
    %12 = vsyncpa [#allocation5], 0
    %s13 = scalar_lea.sflag [#allocation5], 1
    %14 = vsyncpa %s13, 0
    loop: start=0, step=1, limit=4
    $region2: #{tpu_custom_call.1} parent=1 // loop_pre_header
      _
    $region3: #{tpu_custom_call.1} parent=1 // loop_header
      %s16 = sphi 0, %s20
      %p17 = scmp.ge.s32.totalorder %s16, 4
      %s26 = sphi 0, %s28
      %s29 = sphi 0, %s26
      %s30 = sphi 0, %s29
      %s46 = sphi 0, %s30
      %s50 = sphi 0, %s50
      %s52 = sphi 0, %s50
      %s53 = sphi 0, %s52
      %s67 = sphi 0, %s53
      %s71 = sphi 0, %s71
      %s73 = sphi 0, %s71
      %s74 = sphi 0, %s73
      %s88 = sphi 0, %s74
      %s92 = sphi 0, %s92
      %s94 = sphi 0, %s92
      %s95 = sphi 0, %s94
      %s109 = sphi 0, %s95
      %s115 = sphi 0, %s117
      %s118 = sphi 0, %s115
      %s119 = sphi 0, %s118
      %s135 = sphi 0, %s119
      %s141 = sphi 0, %s143
      %s144 = sphi 0, %s141
      %s145 = sphi 0, %s144
      %s161 = sphi 0, %s145
    $region4: #{tpu_custom_call.1} parent=1 // loop_header_branch
      %19 = sbr.rel (%p17) target = $region8
    $region5: #{tpu_custom_call.1} parent=1 // loop_body
      %s21 = ssub.s32 %s16, 1
      %s22 = ssub.s32 %s16, 2
      %s23 = sadd.s32 %s16, 1
      %s24 = ssub.s32 %s16, %s23
      %p25 = scmp.eq.s32.totalorder %s24, 0
      %s27 = sadd.s32 %s26, 1
      %s28 = scalar_select %p25, %s26, %s27
      %p31 = pneg %p25
      %p32 = scmp.eq.s32.totalorder %s16, 1
      %p33 = por %p31, %p32
      %p34 = scmp.ne.s32.totalorder %s26, %s29
      %p35 = scmp.eq.s32.totalorder %s16, 0
      %p36 = por %p34, %p35
      %p37 = scmp.ne.s32.totalorder %s26, %s29
      %p38 = scmp.eq.s32.totalorder %s21, 1
      %p39 = por %p37, %p38
      %p40 = scmp.ne.s32.totalorder %s29, %s30
      %p41 = scmp.eq.s32.totalorder %s21, 0
      %p42 = por %p40, %p41
      %p43 = scmp.ne.s32.totalorder %s29, %s30
      %p44 = scmp.eq.s32.totalorder %s22, 1
      %p45 = por %p43, %p44
      %p47 = scmp.ne.s32.totalorder %s30, %s46
      %p48 = scmp.eq.s32.totalorder %s22, 0
      %p49 = por %p47, %p48
      %s51 = sadd.s32 %s50, 1
      %p54 = scmp.eq.s32.totalorder %s16, 1
      %p55 = scmp.ne.s32.totalorder %s50, %s52
      %p56 = scmp.eq.s32.totalorder %s16, 0
      %p57 = por %p55, %p56
      %p58 = scmp.ne.s32.totalorder %s50, %s52
      %p59 = scmp.eq.s32.totalorder %s21, 1
      %p60 = por %p58, %p59
      %p61 = scmp.ne.s32.totalorder %s52, %s53
      %p62 = scmp.eq.s32.totalorder %s21, 0
      %p63 = por %p61, %p62
      %p64 = scmp.ne.s32.totalorder %s52, %s53
      %p65 = scmp.eq.s32.totalorder %s22, 1
      %p66 = por %p64, %p65
      %p68 = scmp.ne.s32.totalorder %s53, %s67
      %p69 = scmp.eq.s32.totalorder %s22, 0
      %p70 = por %p68, %p69
      %s72 = sadd.s32 %s71, 1
      %p75 = scmp.eq.s32.totalorder %s16, 1
      %p76 = scmp.ne.s32.totalorder %s71, %s73
      %p77 = scmp.eq.s32.totalorder %s16, 0
      %p78 = por %p76, %p77
      %p79 = scmp.ne.s32.totalorder %s71, %s73
      %p80 = scmp.eq.s32.totalorder %s21, 1
      %p81 = por %p79, %p80
      %p82 = scmp.ne.s32.totalorder %s73, %s74
      %p83 = scmp.eq.s32.totalorder %s21, 0
      %p84 = por %p82, %p83
      %p85 = scmp.ne.s32.totalorder %s73, %s74
      %p86 = scmp.eq.s32.totalorder %s22, 1
      %p87 = por %p85, %p86
      %p89 = scmp.ne.s32.totalorder %s74, %s88
      %p90 = scmp.eq.s32.totalorder %s22, 0
      %p91 = por %p89, %p90
      %s93 = sadd.s32 %s92, 1
      %p96 = scmp.eq.s32.totalorder %s16, 1
      %p97 = scmp.ne.s32.totalorder %s92, %s94
      %p98 = scmp.eq.s32.totalorder %s16, 0
      %p99 = por %p97, %p98
      %p100 = scmp.ne.s32.totalorder %s92, %s94
      %p101 = scmp.eq.s32.totalorder %s21, 1
      %p102 = por %p100, %p101
      %p103 = scmp.ne.s32.totalorder %s94, %s95
      %p104 = scmp.eq.s32.totalorder %s21, 0
      %p105 = por %p103, %p104
      %p106 = scmp.ne.s32.totalorder %s94, %s95
      %p107 = scmp.eq.s32.totalorder %s22, 1
      %p108 = por %p106, %p107
      %p110 = scmp.ne.s32.totalorder %s95, %s109
      %p111 = scmp.eq.s32.totalorder %s22, 0
      %p112 = por %p110, %p111
      %s113 = ssub.s32 %s16, %s23
      %p114 = scmp.eq.s32.totalorder %s113, 0
      %s116 = sadd.s32 %s115, 1
      %s117 = scalar_select %p114, %s115, %s116
      %p120 = pneg %p114
      %p121 = scmp.eq.s32.totalorder %s16, 1
      %p122 = por %p120, %p121
      %p123 = scmp.ne.s32.totalorder %s115, %s118
      %p124 = scmp.eq.s32.totalorder %s16, 0
      %p125 = por %p123, %p124
      %p126 = scmp.ne.s32.totalorder %s115, %s118
      %p127 = scmp.eq.s32.totalorder %s21, 1
      %p128 = por %p126, %p127
      %p129 = scmp.ne.s32.totalorder %s118, %s119
      %p130 = scmp.eq.s32.totalorder %s21, 0
      %p131 = por %p129, %p130
      %p132 = scmp.ne.s32.totalorder %s118, %s119
      %p133 = scmp.eq.s32.totalorder %s22, 1
      %p134 = por %p132, %p133
      %p136 = scmp.ne.s32.totalorder %s119, %s135
      %p137 = scmp.eq.s32.totalorder %s22, 0
      %p138 = por %p136, %p137
      %s139 = ssub.s32 %s16, %s23
      %p140 = scmp.eq.s32.totalorder %s139, 0
      %s142 = sadd.s32 %s141, 1
      %s143 = scalar_select %p140, %s141, %s142
      %p146 = pneg %p140
      %p147 = scmp.eq.s32.totalorder %s16, 1
      %p148 = por %p146, %p147
      %p149 = scmp.ne.s32.totalorder %s141, %s144
      %p150 = scmp.eq.s32.totalorder %s16, 0
      %p151 = por %p149, %p150
      %p152 = scmp.ne.s32.totalorder %s141, %s144
      %p153 = scmp.eq.s32.totalorder %s21, 1
      %p154 = por %p152, %p153
      %p155 = scmp.ne.s32.totalorder %s144, %s145
      %p156 = scmp.eq.s32.totalorder %s21, 0
      %p157 = por %p155, %p156
      %p158 = scmp.ne.s32.totalorder %s144, %s145
      %p159 = scmp.eq.s32.totalorder %s22, 1
      %p160 = por %p158, %p159
      %p162 = scmp.ne.s32.totalorder %s145, %s161
      %p163 = scmp.eq.s32.totalorder %s22, 0
      %p164 = por %p162, %p163
      %p165 = scmp.le.s32.totalorder 1, %s16
      %p166 = scmp.lt.s32.totalorder %s16, 3
      %p167 = pnand %p165, %p166
      %p168 = pneg %p167
      // Predicated region
      $region9: #{tpu_custom_call.1} parent=5 // pred_check
        _
      $region10: #{tpu_custom_call.1} parent=5 // pred_check_branch
        %170 = sbr.rel (%p167) target = $region12
      $region11: #{tpu_custom_call.1} parent=5 // pred_region
        %s171 = ssub.s32 %s16, 1
        // Predicated region
        $region13: #{tpu_custom_call.1} parent=11 // pred_check
          %p172 = pneg %p63
        $region14: #{tpu_custom_call.1} parent=11 // pred_check_branch
          %174 = sbr.rel (%p172) target = $region16
        $region15: #{tpu_custom_call.1} parent=11 // pred_region
          %176 = vsyncadd [#allocation4], 0
          %s177 = sshll.u32 %s1, 4
          %s178 = int_to_ptr.hbm [resolvable:$true] %s177
          %s179 = sshll.u32 [#allocation3], 4
          %s180 = int_to_ptr.vmem [resolvable:$true] %s179
          %185 = dma.hbm_to_vmem [thread:$0]  %s178, 256, %s180, [#allocation4], 128, 128, 8
        $region16: #{tpu_custom_call.1} parent=11 // pred_fallthru
          _
        // Predicated region
        $region17: #{tpu_custom_call.1} parent=11 // pred_check
          %p186 = pneg %p84
        $region18: #{tpu_custom_call.1} parent=11 // pred_check_branch
          %188 = sbr.rel (%p186) target = $region20
        $region19: #{tpu_custom_call.1} parent=11 // pred_region
          %190 = vsyncadd [#allocation7], 0
          %s191 = sshll.u32 %s2, 4
          %s192 = int_to_ptr.hbm [resolvable:$true] %s191
          %s193 = sshll.u32 [#allocation6], 4
          %s194 = int_to_ptr.vmem [resolvable:$true] %s193
          %199 = dma.hbm_to_vmem [thread:$0]  %s192, 2048, %s194, [#allocation7], 64, 64, 4
        $region20: #{tpu_custom_call.1} parent=11 // pred_fallthru
          _
        // Predicated region
        $region21: #{tpu_custom_call.1} parent=11 // pred_check
          %p200 = pneg %p105
        $region22: #{tpu_custom_call.1} parent=11 // pred_check_branch
          %202 = sbr.rel (%p200) target = $region24
        $region23: #{tpu_custom_call.1} parent=11 // pred_region
          _
        $region24: #{tpu_custom_call.1} parent=11 // pred_fallthru
          _
      $region12: #{tpu_custom_call.1} parent=5 // pred_fallthru
        _
      %p203 = scmp.lt.s32.totalorder %s16, 2
      // Predicated region
      $region25: #{tpu_custom_call.1} parent=5 // pred_check
        %p204 = pneg %p203
      $region26: #{tpu_custom_call.1} parent=5 // pred_check_branch
        %206 = sbr.rel (%p204) target = $region28
      $region27: #{tpu_custom_call.1} parent=5 // pred_region
        // Predicated region
        $region29: #{tpu_custom_call.1} parent=27 // pred_check
          %p207 = pneg %p36
        $region30: #{tpu_custom_call.1} parent=27 // pred_check_branch
          %209 = sbr.rel (%p207) target = $region32
        $region31: #{tpu_custom_call.1} parent=27 // pred_region
          %p210 = scmp.lt.s32.totalorder %s16, 1
          %s211 = scalar_select %p210, %s16, 1
          %s212 = smul.addr %s211, 8
          %s213 = scalar_lea.vmem %s0, %s212
        $region32: #{tpu_custom_call.1} parent=27 // pred_fallthru
          _
        // Predicated region
        $region33: #{tpu_custom_call.1} parent=27 // pred_check
          %p214 = pneg %p125
        $region34: #{tpu_custom_call.1} parent=27 // pred_check_branch
          %216 = sbr.rel (%p214) target = $region36
        $region35: #{tpu_custom_call.1} parent=27 // pred_region
          %p217 = scmp.lt.s32.totalorder %s16, 1
          %s218 = scalar_select %p217, %s16, 1
          %s219 = smul.addr %s218, 8
          %s220 = scalar_lea.vmem %s4, %s219
        $region36: #{tpu_custom_call.1} parent=27 // pred_fallthru
          _
      $region28: #{tpu_custom_call.1} parent=5 // pred_fallthru
        _
      %p221 = scmp.le.s32.totalorder 1, %s16
      %p222 = scmp.lt.s32.totalorder %s16, 3
      %p223 = pnand %p221, %p222
      %p224 = pneg %p223
      // Predicated region
      $region37: #{tpu_custom_call.1} parent=5 // pred_check
        _
      $region38: #{tpu_custom_call.1} parent=5 // pred_check_branch
        %226 = sbr.rel (%p223) target = $region40
      $region39: #{tpu_custom_call.1} parent=5 // pred_region
        %s227 = ssub.s32 %s16, 1
        // Predicated region
        $region41: #{tpu_custom_call.1} parent=39 // pred_check
          %p228 = pneg %p63
        $region42: #{tpu_custom_call.1} parent=39 // pred_check_branch
          %230 = sbr.rel (%p228) target = $region44
        $region43: #{tpu_custom_call.1} parent=39 // pred_region
          %232 = dma.done [#allocation4], 256
        $region44: #{tpu_custom_call.1} parent=39 // pred_fallthru
          _
        // Predicated region
        $region45: #{tpu_custom_call.1} parent=39 // pred_check
          %p233 = pneg %p84
        $region46: #{tpu_custom_call.1} parent=39 // pred_check_branch
          %235 = sbr.rel (%p233) target = $region48
        $region47: #{tpu_custom_call.1} parent=39 // pred_region
          %237 = dma.done [#allocation7], 2048
        $region48: #{tpu_custom_call.1} parent=39 // pred_fallthru
          _
        %p238 = scmp.lt.s32.totalorder %s21, 1
        %s239 = scalar_select %p238, %s21, 1
        %s240 = smul.addr %s239, 8
        %s241 = scalar_lea.vmem %s0, %s240
        %p242 = pneg %p42
        %p243 = pneg %p39
        %p244 = pneg %p63
        %p245 = pneg %p60
        %p246 = pneg %p84
        %p247 = pneg %p81
        %p248 = pneg %p105
        %p249 = pneg %p102
        %p250 = scmp.lt.s32.totalorder %s21, 1
        %s251 = scalar_select %p250, %s21, 1
        %s252 = smul.addr %s251, 8
        %s253 = scalar_lea.vmem %s4, %s252
        %p254 = pneg %p131
        %p255 = pneg %p128
        %p256 = pneg %p157
        %p257 = pneg %p154
        %s258 = sand.u32 %s144, 1
        %s259 = scalar_lea.sflag [#allocation5], %s258
        %s260 = sand.u32 %s144, 1
        %s261 = smul.addr %s260, 8
        %s262 = scalar_lea.vmem [#allocation8], %s261
        %p263 = scmp.lt.s32.totalorder %s21, 1
        %s264 = scalar_select %p263, %s21, 1
        %s265 = smul.addr %s264, 8
        %s266 = scalar_lea.vmem %s0, %s265
        %p267 = scmp.lt.s32.totalorder %s21, 1
        %s268 = scalar_select %p267, %s21, 1
        %s269 = smul.addr %s268, 8
        %s270 = scalar_lea.vmem %s4, %s269
        %v272 = vld [vmem:[%s266] sm:$0xff]
        %v273 = vpack.c.bf16 %v272, %v272
        %v274 = vld [vmem:[%s3] ss:$2 sm:$0x3]
        %v275 = vld [vmem:[%s3 + $0x1] sm:$0x1]
        %v276 = vld [vmem:[#allocation3] sm:$0xff]
        %v277 = vld [vmem:[#allocation3 + $0x8] sm:$0xff]
        %v279 = vperm.slane %v274, 0
        %v280 = vperm.slane %v274, 1
        %v285 = vunpack.c.l.b16 %v276
        %v286 = vunpack.c.h.b16 %v276
        %v287 = vunpack.c.l.b16 %v277
        %v288 = vunpack.c.h.b16 %v277
        %v289 = vpack.c.b16 %v287, %v285
        %v290 = vpack.c.b16 %v288, %v286
        %vm293 = vcmask 130048
        %v295 = vsel %vm293, %v273, 0
        %297 = vmatpush.bf16.msra.mxu0 0
        %298 = vmatpush.bf16.msra.mxu0 0
        %299 = vmatpush.bf16.msra.mxu0 0
        %300 = vmatpush.bf16.msra.mxu0 0
        %301 = vmatpush.bf16.msra.mxu0 0
        %302 = vmatpush.bf16.msra.mxu0 0
        %303 = vmatpush.bf16.msra.mxu0 0
        %304 = vmatpush.bf16.msra.mxu0 %v289
        %305 = vmatmul.bf16.gmra.mxu0 %v295
        %v306 = vpop.f32.mrf.mxu0
        %v307 = vadd.f32 %v279, %v306
        %v308 = vpop.f32.mrf.mxu0
        %309 = vdwg.mxu0
        %310 = vmatpush.bf16.msra.mxu0 0
        %311 = vmatpush.bf16.msra.mxu0 0
        %312 = vmatpush.bf16.msra.mxu0 0
        %313 = vmatpush.bf16.msra.mxu0 0
        %314 = vmatpush.bf16.msra.mxu0 0
        %315 = vmatpush.bf16.msra.mxu0 0
        %316 = vmatpush.bf16.msra.mxu0 0
        %317 = vmatpush.bf16.msra.mxu0 %v290
        %318 = vmatmul.bf16.gmra.mxu0 %v295
        %v319 = vpop.f32.mrf.mxu0
        %v320 = vadd.f32 %v280, %v319
        %v321 = vpop.f32.mrf.mxu0
        %322 = vdwg.mxu0
        %v323 = vmax.f32 %v307, 0.0
        %v324 = vmax.f32 %v320, 0.0
        %v325 = vpack.c.bf16 %v323, %v323
        %v326 = vpack.c.bf16 %v324, %v324
        %v327 = vld [vmem:[#allocation6] sm:$0xf]
        %v328 = vld [vmem:[#allocation6 + $0x4] sm:$0xf]
        %v329 = vld [vmem:[#allocation6 + $0x8] sm:$0xf]
        %v330 = vld [vmem:[#allocation6 + $0xc] sm:$0xf]
        %v331 = vld [vmem:[#allocation6 + $0x10] sm:$0xf]
        %v332 = vld [vmem:[#allocation6 + $0x14] sm:$0xf]
        %v333 = vld [vmem:[#allocation6 + $0x18] sm:$0xf]
        %v334 = vld [vmem:[#allocation6 + $0x1c] sm:$0xf]
        %v335 = vld [vmem:[#allocation6 + $0x20] sm:$0xf]
        %v336 = vld [vmem:[#allocation6 + $0x24] sm:$0xf]
        %v337 = vld [vmem:[#allocation6 + $0x28] sm:$0xf]
        %v338 = vld [vmem:[#allocation6 + $0x2c] sm:$0xf]
        %v339 = vld [vmem:[#allocation6 + $0x30] sm:$0xf]
        %v340 = vld [vmem:[#allocation6 + $0x34] sm:$0xf]
        %v341 = vld [vmem:[#allocation6 + $0x38] sm:$0xf]
        %v342 = vld [vmem:[#allocation6 + $0x3c] sm:$0xf]
        %v343 = vld [vmem:[#allocation6 + $0x40] sm:$0xf]
        %v344 = vld [vmem:[#allocation6 + $0x44] sm:$0xf]
        %v345 = vld [vmem:[#allocation6 + $0x48] sm:$0xf]
        %v346 = vld [vmem:[#allocation6 + $0x4c] sm:$0xf]
        %v347 = vld [vmem:[#allocation6 + $0x50] sm:$0xf]
        %v348 = vld [vmem:[#allocation6 + $0x54] sm:$0xf]
        %v349 = vld [vmem:[#allocation6 + $0x58] sm:$0xf]
        %v350 = vld [vmem:[#allocation6 + $0x5c] sm:$0xf]
        %v351 = vld [vmem:[#allocation6 + $0x60] sm:$0xf]
        %v352 = vld [vmem:[#allocation6 + $0x64] sm:$0xf]
        %v353 = vld [vmem:[#allocation6 + $0x68] sm:$0xf]
        %v354 = vld [vmem:[#allocation6 + $0x6c] sm:$0xf]
        %v355 = vld [vmem:[#allocation6 + $0x70] sm:$0xf]
        %v356 = vld [vmem:[#allocation6 + $0x74] sm:$0xf]
        %v357 = vld [vmem:[#allocation6 + $0x78] sm:$0xf]
        %v358 = vld [vmem:[#allocation6 + $0x7c] sm:$0xf]
        %v359 = vperm.slane %v275, 0
        %v392 = vunpack.c.l.b16 %v327
        %v393 = vunpack.c.l.b16 %v328
        %v394 = vunpack.c.l.b16 %v329
        %v395 = vunpack.c.l.b16 %v330
        %v396 = vunpack.c.l.b16 %v331
        %v397 = vunpack.c.l.b16 %v332
        %v398 = vunpack.c.l.b16 %v333
        %v399 = vunpack.c.l.b16 %v334
        %v400 = vunpack.c.l.b16 %v335
        %v401 = vunpack.c.l.b16 %v336
        %v402 = vunpack.c.l.b16 %v337
        %v403 = vunpack.c.l.b16 %v338
        %v404 = vunpack.c.l.b16 %v339
        %v405 = vunpack.c.l.b16 %v340
        %v406 = vunpack.c.l.b16 %v341
        %v407 = vunpack.c.l.b16 %v342
        %v408 = vunpack.c.l.b16 %v343
        %v409 = vunpack.c.l.b16 %v344
        %v410 = vunpack.c.l.b16 %v345
        %v411 = vunpack.c.l.b16 %v346
        %v412 = vunpack.c.l.b16 %v347
        %v413 = vunpack.c.l.b16 %v348
        %v414 = vunpack.c.l.b16 %v349
        %v415 = vunpack.c.l.b16 %v350
        %v416 = vunpack.c.l.b16 %v351
        %v417 = vunpack.c.l.b16 %v352
        %v418 = vunpack.c.l.b16 %v353
        %v419 = vunpack.c.l.b16 %v354
        %v420 = vunpack.c.l.b16 %v355
        %v421 = vunpack.c.l.b16 %v356
        %v422 = vunpack.c.l.b16 %v357
        %v423 = vunpack.c.l.b16 %v358
        %v424 = vpack.c.b16 %v393, %v392
        %v425 = vpack.c.b16 %v395, %v394
        %v426 = vpack.c.b16 %v397, %v396
        %v427 = vpack.c.b16 %v399, %v398
        %v428 = vpack.c.b16 %v401, %v400
        %v429 = vpack.c.b16 %v403, %v402
        %v430 = vpack.c.b16 %v405, %v404
        %v431 = vpack.c.b16 %v407, %v406
        %v432 = vpack.c.b16 %v409, %v408
        %v433 = vpack.c.b16 %v411, %v410
        %v434 = vpack.c.b16 %v413, %v412
        %v435 = vpack.c.b16 %v415, %v414
        %v436 = vpack.c.b16 %v417, %v416
        %v437 = vpack.c.b16 %v419, %v418
        %v438 = vpack.c.b16 %v421, %v420
        %v439 = vpack.c.b16 %v423, %v422
        %456 = vmatpush.bf16.msra.mxu0 %v431
        %457 = vmatpush.bf16.msra.mxu0 %v430
        %458 = vmatpush.bf16.msra.mxu0 %v429
        %459 = vmatpush.bf16.msra.mxu0 %v428
        %460 = vmatpush.bf16.msra.mxu0 %v427
        %461 = vmatpush.bf16.msra.mxu0 %v426
        %462 = vmatpush.bf16.msra.mxu0 %v425
        %463 = vmatpush.bf16.msra.mxu0 %v424
        %464 = vmatmul.bf16.gmra.mxu0 %v325
        %v465 = vpop.f32.mrf.mxu0
        %v466 = vadd.f32 %v359, %v465
        %v467 = vpop.f32.mrf.mxu0
        %468 = vdwg.mxu0
        %469 = vmatpush.bf16.msra.mxu0 %v439
        %470 = vmatpush.bf16.msra.mxu0 %v438
        %471 = vmatpush.bf16.msra.mxu0 %v437
        %472 = vmatpush.bf16.msra.mxu0 %v436
        %473 = vmatpush.bf16.msra.mxu0 %v435
        %474 = vmatpush.bf16.msra.mxu0 %v434
        %475 = vmatpush.bf16.msra.mxu0 %v433
        %476 = vmatpush.bf16.msra.mxu0 %v432
        %477 = vmatmul.bf16.gmra.mxu0 %v326
        %v478 = vpop.f32.mrf.mxu0
        %v479 = vadd.f32 %v466, %v478
        %v480 = vpop.f32.mrf.mxu0
        %481 = vdwg.mxu0
        %482 = vrot.lane.b32.xlu0 %v479, 64
        %v483 = vpop.permute.xlu0 %482
        %v484 = vmax.f32 %v483, -5.0
        %v485 = vmin.f32 %v484, 2.0
        %v486 = vmul.f32 %v485, 1.442695
        %v487 = vpow.pop %v486
        %488 = vst [vmem:[#allocation2] sm:$0xff] 0.0
        %v489 = vld [vmem:[%s270] sm:$0xff]
        %vm490 = vcmask 31744
        %491 = vst.msk [vmem:[#allocation2] sm:$0xff] %vm490, %v489
        %v492 = vld [vmem:[#allocation2] sm:$0xff]
        %v493 = vmul.f32 %v487, %v492
        %v494 = vadd.f32 %v479, %v493
        %v495 = vlaneseq
        %v496 = vand.u32 %v495, 127
        %vm497 = vcmp.lt.s32.totalorder %v496, 4
        %v498 = vand.u32 2147483647, %v494
        %v499 = vmul.f32 %v498, -2.0
        %v500 = vmul.f32 %v499, 1.442695
        %v501 = vpow.pop %v500
        %v502 = vmul.f32 %v494, -2.0
        %v503 = vmax.f32 %v502, 0.0
        %v504 = vadd.f32 %v501, 1.0
        %v505 = vlog2.pop %v504
        %v506 = vmul.f32 %v505, 0.6931472
        %v507 = vmul.f32 -0.5, %v501
        %v508 = vadd.f32 %v507, 1.0
        %v509 = vmul.f32 %v508, %v501
        %v510 = vand.u32 2147483647, %v501
        %vm511 = vcmp.lt.f32.partialorder %v510, 0.0004427343
        %v512 = vsel %vm511, %v509, %v506
        %v513 = vadd.f32 %v503, %v512
        %v514 = vsub.f32 0.6931472, %v494
        %v515 = vsub.f32 %v514, %v513
        %v516 = vmul.f32 %v515, 2.0
        %v517 = vmul.f32 %v492, -0.5
        %v518 = vmul.f32 %v517, %v492
        %v519 = vsub.f32 %v518, %v485
        %v520 = vsub.f32 %v519, 0.9189385
        %v521 = vsub.f32 %v520, %v516
        %v522 = vsel %vm497, %v521, 0.0
        %523 = vadd.xlane.f32.xlu0 %v522
        %v524 = vpop.xlane.xlu0 %523
        %vm525 = vcmp.ge.f32.partialorder %v494, 0.0
        %v526 = vsel %vm525, 1.0, -1.0
        %v527 = vsub.f32 1.0, %v501
        %v528 = vmul.f32 %v526, %v527
        %v529 = vadd.f32 %v501, 1.0
        %v530 = vrcp.pop %v529
        %v531 = vmul.f32 %v529, %v530
        %v532 = vsub.f32 1.0, %v531
        %v533 = vmul.f32 %v530, %v532
        %v534 = vadd.f32 %v530, %v533
        %vm535 = vweird.f32 %v529
        %vm536 = vweird.f32 %v530
        %vm537 = vmor %vm535, %vm536
        %v538 = vsel %vm537, %v530, %v534
        %v539 = vand.u32 2147483647, %v529
        %vm540 = vcmp.eq.f32.partialorder %v539, 8.507059e+37
        %v541 = vand.u32 %v529, 2147483648
        %v542 = vor.u32 1.1754944e-38, %v541
        %v543 = vsel %vm540, %v542, %v538
        %v544 = vmul.f32 %v528, %v543
        %v545 = vsel %vm497, %v544, 0.0
        %vm546 = vcmp.eq.s32.totalorder %v496, 4
        %v547 = vsel %vm546, %v524, %v545
        %548 = vst [vmem:[%s262] sm:$0xff] %v547
        %s549 = sand.u32 %s144, 1
        %s550 = scalar_lea.sflag [#allocation5], %s549
        %s551 = sand.u32 %s144, 1
        %s552 = smul.addr %s551, 8
        %s553 = scalar_lea.vmem [#allocation8], %s552
        // Predicated region
        $region49: #{tpu_custom_call.1} parent=39 // pred_check
          %p554 = pneg %p154
        $region50: #{tpu_custom_call.1} parent=39 // pred_check_branch
          %556 = sbr.rel (%p554) target = $region52
        $region51: #{tpu_custom_call.1} parent=39 // pred_region
          %558 = vsyncadd %s550, 0
          %s559 = smul.addr %s21, 8
          %s560 = scalar_lea.hbm %s5, %s559
          %s562 = sshll.u32 %s553, 4
          %s563 = int_to_ptr.vmem [resolvable:$true] %s562
          %s564 = sshll.u32 %s560, 4
          %s565 = int_to_ptr.hbm [resolvable:$true] %s564
          %567 = dma.vmem_to_hbm [thread:$0]  %s563, 128, %s565, %s550
        $region52: #{tpu_custom_call.1} parent=39 // pred_fallthru
          _
      $region40: #{tpu_custom_call.1} parent=5 // pred_fallthru
        _
      %p568 = scmp.le.s32.totalorder 2, %s16
      // Predicated region
      $region53: #{tpu_custom_call.1} parent=5 // pred_check
        %p569 = pneg %p568
      $region54: #{tpu_custom_call.1} parent=5 // pred_check_branch
        %571 = sbr.rel (%p569) target = $region56
      $region55: #{tpu_custom_call.1} parent=5 // pred_region
        %s572 = ssub.s32 %s16, 2
        // Predicated region
        $region57: #{tpu_custom_call.1} parent=55 // pred_check
          %p573 = pneg %p160
        $region58: #{tpu_custom_call.1} parent=55 // pred_check_branch
          %575 = sbr.rel (%p573) target = $region60
        $region59: #{tpu_custom_call.1} parent=55 // pred_region
          %s576 = sand.u32 %s145, 1
          %s577 = scalar_lea.sflag [#allocation5], %s576
          %s578 = sand.u32 %s145, 1
          %s579 = smul.addr %s578, 8
          %s580 = scalar_lea.vmem [#allocation8], %s579
          %582 = dma.done %s577, 128
        $region60: #{tpu_custom_call.1} parent=55 // pred_fallthru
          _
      $region56: #{tpu_custom_call.1} parent=5 // pred_fallthru
        _
    $region6: #{tpu_custom_call.1} parent=1 // loop_footer
      %s20 = sadd.s32 1, %s16
    $region7: #{tpu_custom_call.1} parent=1 // loop_footer_branch
      %15 = sbr.rel target = $region3
    $region8: #{tpu_custom_call.1} parent=1 // loop_exit
      _
    %583 = vsyncpa [#allocation4], 1
    %s584 = scalar_lea.sflag [#allocation4], 1
    %585 = vsyncpa %s584, 1
    %586 = vsyncpa [#allocation7], 1
    %587 = vsyncpa [#allocation5], 1
    %s588 = scalar_lea.sflag [#allocation5], 1
    %589 = vsyncpa %s588, 1

</llo_original>
